<compile_context>
chip_gen: v7x
topology: tpu7x:2x2x1
jax: 0.10.0
libtpu: 0.0.40
codegen_flags: <defaults>
</compile_context>

<pallas_src>
import jax
import jax.numpy as jnp
import numpy as np
from jax.experimental import pallas as pl
from jax.experimental.pallas import tpu as pltpu


def _silu(x):
    return x * jax.nn.sigmoid(x)


def cond_emb_kernel(
    x_ref,      # (N, Cin)  bf16, N = block_B * L, flattened (batch, length) rows
    t_ref,      # (bB, 1)   f32 timestep
    mf_ref,     # (N, 1)    f32, 0.0 where pos-in-window == 0, else 1.0
    ml_ref,     # (N, 1)    f32, 0.0 where pos-in-window == L-1, else 1.0
    pool_ref,   # (bB, N)   f32, mean-pool selector (1/L on own window rows)
    w1_ref,     # (3, Cin, C1) bf16 conv1 weight, tap-major
    sc1_ref,    # (1, C1)   f32 folded BN1 scale
    sh1_ref,    # (1, C1)   f32 folded (conv1 bias + BN1) shift
    w2_ref,     # (3, C1, C2) bf16
    sc2_ref,    # (1, C2)
    sh2_ref,    # (1, C2)
    wt1_ref,    # (1, H)    time Linear(1->H) weight
    bt1_ref,    # (1, H)
    wt2_ref,    # (H, H)    time Linear(H->H) weight, (in, out)
    bt2_ref,    # (1, H)
    out_ref,    # (bB, H)   f32
    shift1_ref,  # scratch (N, Cin) f32
    shift2_ref,  # scratch (N, C1)  f32
):
    N = x_ref.shape[0]
    keep_first = mf_ref[...] > 0.5   # keep shifted-prev row (pos != 0)
    keep_last = ml_ref[...] > 0.5    # keep shifted-next row (pos != L-1)

    def conv3(y_bf16, w_ref, s_ref):
        """Conv1d(k=3, pad=1) over flattened (batch*len, C) rows, bf16 MXU / f32 acc."""
        # centre tap
        acc = jnp.dot(y_bf16, w_ref[1], preferred_element_type=jnp.float32)
        # previous-position tap: s[r] = y[r-1]; window-start rows are zero padding
        s_ref[pl.ds(1, N - 1), :] = y_bf16[:N - 1, :].astype(jnp.float32)
        prev = jnp.where(keep_first, s_ref[...], 0.0).astype(jnp.bfloat16)
        acc += jnp.dot(prev, w_ref[0], preferred_element_type=jnp.float32)
        # next-position tap: s[r] = y[r+1]; window-end rows are zero padding
        s_ref[pl.ds(0, N - 1), :] = y_bf16[1:, :].astype(jnp.float32)
        nxt = jnp.where(keep_last, s_ref[...], 0.0).astype(jnp.bfloat16)
        acc += jnp.dot(nxt, w_ref[2], preferred_element_type=jnp.float32)
        return acc                                         # (N, C_out) f32

    x = x_ref[...]                                         # (N, Cin) bf16
    h1 = _silu(conv3(x, w1_ref, shift1_ref) * sc1_ref[...] + sh1_ref[...])          # f32
    # TODO(synk): Dropout is treated as eval-mode identity (no RNG mask applied).
    h2 = _silu(conv3(h1.astype(jnp.bfloat16), w2_ref, shift2_ref)
               * sc2_ref[...] + sh2_ref[...])                                        # f32

    # AdaptiveAvgPool1d(1): per-window mean as a small matmul
    cond_emb = jnp.dot(pool_ref[...], h2, preferred_element_type=jnp.float32)        # (bB, C2)

    # time embedding MLP: Linear(1->H) -> SiLU -> Linear(H->H)   (tiny, kept f32)
    te = _silu(t_ref[...] * wt1_ref[...] + bt1_ref[...])                             # (bB, H)
    te = jnp.dot(te, wt2_ref[...], preferred_element_type=jnp.float32) + bt2_ref[...]

    out_ref[...] = (cond_emb + te).astype(out_ref.dtype)


def _choose_block_b(batch, length, target_rows=256):
    """Largest batch block that divides `batch`, gives ~target_rows MXU rows per
    grid step, and keeps partial blocks 8-sublane friendly."""
    target = max(1, target_rows // max(length, 1))
    if batch <= target:
        return batch
    for cand in range(min(target, batch), 0, -1):
        if batch % cand == 0 and (cand % 8 == 0 or cand == batch):
            return cand
    return batch


def condition_embedding(condition, t, params, eps=1e-5):
    """condition: (B, window, num_features); t: (B,).  Returns (B, hidden_dim) f32."""
    B, L, Cin = condition.shape
    C1 = params["w1"].shape[2]
    C2 = params["w2"].shape[2]
    H = params["wt2"].shape[0]

    block_b = _choose_block_b(B, L)
    nblk = B // block_b
    N = block_b * L

    # Fold conv bias + eval-mode BatchNorm into per-channel scale / shift.
    sc1 = params["bn1_gamma"] / jnp.sqrt(params["bn1_var"] + eps)
    sh1 = (params["b1"] - params["bn1_mean"]) * sc1 + params["bn1_beta"]
    sc2 = params["bn2_gamma"] / jnp.sqrt(params["bn2_var"] + eps)
    sh2 = (params["b2"] - params["bn2_mean"]) * sc2 + params["bn2_beta"]

    # Flattened channels-last activations, bf16 halves input DMA bytes.
    x2d = condition.reshape(B * L, Cin).astype(jnp.bfloat16)
    t2 = t.astype(jnp.float32).reshape(B, 1)

    # Static per-window-position boundary masks and mean-pool matrix (VMEM-resident).
    pos = np.arange(N) % L
    m_first = jnp.asarray((pos != 0).astype(np.float32).reshape(N, 1))
    m_last = jnp.asarray((pos != L - 1).astype(np.float32).reshape(N, 1))
    seg = np.arange(N) // L
    pool = jnp.asarray(
        (seg[None, :] == np.arange(block_b)[:, None]).astype(np.float32) / float(L))

    w1 = params["w1"].astype(jnp.bfloat16)
    w2 = params["w2"].astype(jnp.bfloat16)

    args = (
        x2d, t2, m_first, m_last, pool,
        w1, sc1.reshape(1, C1).astype(jnp.float32), sh1.reshape(1, C1).astype(jnp.float32),
        w2, sc2.reshape(1, C2).astype(jnp.float32), sh2.reshape(1, C2).astype(jnp.float32),
        params["wt1"].astype(jnp.float32), params["bt1"].reshape(1, H).astype(jnp.float32),
        params["wt2"].astype(jnp.float32), params["bt2"].reshape(1, H).astype(jnp.float32),
    )

    def const(*shape):
        return pl.BlockSpec(shape, lambda i, _n=len(shape): (0,) * _n)

    in_specs = [
        pl.BlockSpec((N, Cin), lambda i: (i, 0)),        # condition rows (batch block)
        pl.BlockSpec((block_b, 1), lambda i: (i, 0)),    # t (batch block)
        const(N, 1), const(N, 1), const(block_b, N),     # masks + pool
        const(3, Cin, C1), const(1, C1), const(1, C1),   # conv1 params
        const(3, C1, C2), const(1, C2), const(1, C2),    # conv2 params
        const(1, H), const(1, H), const(H, H), const(1, H),  # time MLP params
    ]
    out_spec = pl.BlockSpec((block_b, H), lambda i: (i, 0))

    # Advisory cost estimate for the XLA scheduler.
    flops = 2 * B * L * 3 * (Cin * C1 + C1 * C2) + 2 * B * (H * H + L * C2)
    transc = B * (L * (C1 + C2) + H)
    bytes_acc = (x2d.size * 2 + t2.size * 4 + (w1.size + w2.size) * 2
                 + (2 * C1 + 2 * C2 + 3 * H + H * H) * 4 + B * H * 4)

    # Explicit VMEM budget: double-buffered per-block I/O + resident params + f32 live
    # intermediates + scratch, with generous headroom (well under v7x's 64 MiB).
    block_bytes = (
        2 * (N * Cin * 2 + block_b * 4)                       # double-buffered x, t
        + (w1.size + w2.size) * 2                             # bf16 weights
        + (2 * C1 + 2 * C2 + 3 * H + H * H + block_b * N + 2 * N) * 4
        + 2 * block_b * H * 4                                 # double-buffered output
        + N * (Cin + C1) * 4                                  # shift scratch
        + N * (2 * C1 + 2 * C2) * 4                           # f32 intermediates (rough)
    )
    vmem_limit = int(min(max(4 * block_bytes, 8 * 1024 * 1024), 48 * 1024 * 1024))

    return pl.pallas_call(
        cond_emb_kernel,
        out_shape=jax.ShapeDtypeStruct((B, H), jnp.float32),
        grid=(nblk,),
        in_specs=in_specs,
        out_specs=out_spec,
        scratch_shapes=[pltpu.VMEM((N, Cin), jnp.float32),
                        pltpu.VMEM((N, C1), jnp.float32)],
        compiler_params=pltpu.CompilerParams(
            dimension_semantics=("parallel",),
            vmem_limit_bytes=vmem_limit),
        cost_estimate=pl.CostEstimate(
            flops=int(flops), transcendentals=int(transc), bytes_accessed=int(bytes_acc)),
    )(*args)


def init_params(key, num_features, hidden_dim):
    C1 = hidden_dim // 2
    H = hidden_dim
    ks = jax.random.split(key, 16)
    n = lambda k, shape, s=0.2: s * jax.random.normal(k, shape, jnp.float32)
    return dict(
        w1=n(ks[0], (3, num_features, C1)),
        b1=n(ks[1], (C1,), 0.1),
        bn1_gamma=1.0 + n(ks[2], (C1,), 0.1),
        bn1_beta=n(ks[3], (C1,), 0.1),
        bn1_mean=n(ks[4], (C1,), 0.05),
        bn1_var=1.0 + jnp.abs(n(ks[5], (C1,), 0.1)),
        w2=n(ks[6], (3, C1, H)),
        b2=n(ks[7], (H,), 0.1),
        bn2_gamma=1.0 + n(ks[8], (H,), 0.1),
        bn2_beta=n(ks[9], (H,), 0.1),
        bn2_mean=n(ks[10], (H,), 0.05),
        bn2_var=1.0 + jnp.abs(n(ks[11], (H,), 0.1)),
        wt1=n(ks[12], (1, H), 0.5),
        bt1=n(ks[13], (H,), 0.1),
        wt2=n(ks[14], (H, H)),
        bt2=n(ks[15], (H,), 0.1),
    )


def reference(condition, t, params, eps=1e-5):
    """Pure-JAX f32 eval-mode reference (mirrors the PyTorch forward)."""
    x = condition.astype(jnp.float32)
    B, L, _ = x.shape
    xp = jnp.pad(x, ((0, 0), (1, 1), (0, 0)))
    y = sum(jnp.einsum("blc,cd->bld", xp[:, k:k + L, :], params["w1"][k]) for k in range(3))
    y = y + params["b1"]
    y = (y - params["bn1_mean"]) / jnp.sqrt(params["bn1_var"] + eps) * params["bn1_gamma"] + params["bn1_beta"]
    y = y * jax.nn.sigmoid(y)
    yp = jnp.pad(y, ((0, 0), (1, 1), (0, 0)))
    z = sum(jnp.einsum("blc,cd->bld", yp[:, k:k + L, :], params["w2"][k]) for k in range(3))
    z = z + params["b2"]
    z = (z - params["bn2_mean"]) / jnp.sqrt(params["bn2_var"] + eps) * params["bn2_gamma"] + params["bn2_beta"]
    z = z * jax.nn.sigmoid(z)
    cond_emb = z.mean(axis=1)
    tt = t.astype(jnp.float32).reshape(B, 1)
    te = tt @ params["wt1"] + params["bt1"]
    te = te * jax.nn.sigmoid(te)
    te = te @ params["wt2"] + params["bt2"]
    return cond_emb + te


if __name__ == "__main__":
    B, WINDOW, NUM_FEATURES, HIDDEN = 2, 16, 4, 32
    key = jax.random.PRNGKey(0)
    kp, kc, kt = jax.random.split(key, 3)
    params = init_params(kp, NUM_FEATURES, HIDDEN)
    condition = jax.random.normal(kc, (B, WINDOW, NUM_FEATURES), jnp.float32)
    t = jax.random.randint(kt, (B,), 0, 10)

    out = jax.block_until_ready(condition_embedding(condition, t, params))
    ref = reference(condition, t, params)
    assert out.shape == (B, HIDDEN)
    # bf16 MXU operands (f32 accumulation) vs. the pure-f32 reference -> looser tolerance.
    assert jnp.allclose(out, ref, atol=3e-2, rtol=3e-2), "kernel mismatch vs reference"
    print("KERNEL_OK")
</pallas_src>

<mosaic_0001>
module attributes {stable_mosaic.version = 11 : i64} {
  func.func @cond_emb_kernel(%arg0: i32, %arg1: memref<32x4xbf16, #tpu.memory_space<vmem>>, %arg2: memref<2x1xf32, #tpu.memory_space<vmem>>, %arg3: memref<32x1xf32, #tpu.memory_space<vmem>>, %arg4: memref<32x1xf32, #tpu.memory_space<vmem>>, %arg5: memref<2x32xf32, #tpu.memory_space<vmem>>, %arg6: memref<3x4x16xbf16, #tpu.memory_space<vmem>>, %arg7: memref<1x16xf32, #tpu.memory_space<vmem>>, %arg8: memref<1x16xf32, #tpu.memory_space<vmem>>, %arg9: memref<3x16x32xbf16, #tpu.memory_space<vmem>>, %arg10: memref<1x32xf32, #tpu.memory_space<vmem>>, %arg11: memref<1x32xf32, #tpu.memory_space<vmem>>, %arg12: memref<1x32xf32, #tpu.memory_space<vmem>>, %arg13: memref<1x32xf32, #tpu.memory_space<vmem>>, %arg14: memref<32x32xf32, #tpu.memory_space<vmem>>, %arg15: memref<1x32xf32, #tpu.memory_space<vmem>>, %arg16: memref<2x32xf32, #tpu.memory_space<vmem>>, %arg17: memref<32x4xf32, #tpu.memory_space<vmem>>, %arg18: memref<32x16xf32, #tpu.memory_space<vmem>>) attributes {dimension_semantics = [#tpu.dimension_semantics<parallel>], iteration_bounds = array<i64: 1>, scalar_prefetch = 0 : i64, scratch_operands = 2 : i64, tpu.core_type = #tpu.core_type<tc>, window_params = [{transform_indices = @transform_0, window_bounds = array<i64: 32, 4>}, {transform_indices = @transform_1, window_bounds = array<i64: 2, 1>}, {pipeline_mode = #tpu.pipeline_mode<synchronous>, transform_indices = @transform_2, window_bounds = array<i64: 32, 1>}, {pipeline_mode = #tpu.pipeline_mode<synchronous>, transform_indices = @transform_3, window_bounds = array<i64: 32, 1>}, {pipeline_mode = #tpu.pipeline_mode<synchronous>, transform_indices = @transform_4, window_bounds = array<i64: 2, 32>}, {pipeline_mode = #tpu.pipeline_mode<synchronous>, transform_indices = @transform_5, window_bounds = array<i64: 3, 4, 16>}, {pipeline_mode = #tpu.pipeline_mode<synchronous>, transform_indices = @transform_6, window_bounds = array<i64: 1, 16>}, {pipeline_mode = #tpu.pipeline_mode<synchronous>, transform_indices = @transform_7, window_bounds = array<i64: 1, 16>}, {pipeline_mode = #tpu.pipeline_mode<synchronous>, transform_indices = @transform_8, window_bounds = array<i64: 3, 16, 32>}, {pipeline_mode = #tpu.pipeline_mode<synchronous>, transform_indices = @transform_9, window_bounds = array<i64: 1, 32>}, {pipeline_mode = #tpu.pipeline_mode<synchronous>, transform_indices = @transform_10, window_bounds = array<i64: 1, 32>}, {pipeline_mode = #tpu.pipeline_mode<synchronous>, transform_indices = @transform_11, window_bounds = array<i64: 1, 32>}, {pipeline_mode = #tpu.pipeline_mode<synchronous>, transform_indices = @transform_12, window_bounds = array<i64: 1, 32>}, {pipeline_mode = #tpu.pipeline_mode<synchronous>, transform_indices = @transform_13, window_bounds = array<i64: 32, 32>}, {pipeline_mode = #tpu.pipeline_mode<synchronous>, transform_indices = @transform_14, window_bounds = array<i64: 1, 32>}, {transform_indices = @transform_15, window_bounds = array<i64: 2, 32>}]} {
    %c0 = arith.constant 0 : index
    %c0_0 = arith.constant 0 : index
    %0 = vector.load %arg3[%c0, %c0_0] : memref<32x1xf32, #tpu.memory_space<vmem>>, vector<32x1xf32>
    %cst = arith.constant 5.000000e-01 : f32
    %1 = vector.broadcast %cst : f32 to vector<32x1xf32>
    %2 = arith.cmpf ogt, %0, %1 : vector<32x1xf32>
    %c0_1 = arith.constant 0 : index
    %c0_2 = arith.constant 0 : index
    %3 = vector.load %arg4[%c0_1, %c0_2] : memref<32x1xf32, #tpu.memory_space<vmem>>, vector<32x1xf32>
    %cst_3 = arith.constant 5.000000e-01 : f32
    %4 = vector.broadcast %cst_3 : f32 to vector<32x1xf32>
    %5 = arith.cmpf ogt, %3, %4 : vector<32x1xf32>
    %c0_4 = arith.constant 0 : index
    %c0_5 = arith.constant 0 : index
    %6 = vector.load %arg1[%c0_4, %c0_5] : memref<32x4xbf16, #tpu.memory_space<vmem>>, vector<32x4xbf16>
    %c1 = arith.constant 1 : index
    %c0_6 = arith.constant 0 : index
    %c0_7 = arith.constant 0 : index
    %7 = vector.load %arg6[%c1, %c0_6, %c0_7] : memref<3x4x16xbf16, #tpu.memory_space<vmem>>, vector<1x4x16xbf16>
    %8 = vector.shape_cast %7 : vector<1x4x16xbf16> to vector<4x16xbf16>
    %cst_8 = arith.constant dense<0.000000e+00> : vector<32x16xf32>
    %9 = tpu.matmul %6, %8, %cst_8 {dimension_numbers = #tpu.dot_dimension_numbers<[1], [0], [0], [1], [0, 0, 1, 1], [], []>} : vector<32x4xbf16>, vector<4x16xbf16>, vector<32x16xf32> -> vector<32x16xf32>
    %10 = vector.extract_strided_slice %6 {offsets = [0, 0], sizes = [31, 4], strides = [1, 1]} : vector<32x4xbf16> to vector<31x4xbf16>
    %11 = arith.extf %10 : vector<31x4xbf16> to vector<31x4xf32>
    %c1_9 = arith.constant 1 : index
    %c0_10 = arith.constant 0 : index
    %12 = vector.load %arg17[%c1_9, %c0_10] : memref<32x4xf32, #tpu.memory_space<vmem>>, vector<31x4xf32>
    tpu.vector_store %arg17[%c1_9, %c0_10], %11 {strides = array<i32>} : memref<32x4xf32, #tpu.memory_space<vmem>>, vector<31x4xf32>,
    %c0_11 = arith.constant 0 : index
    %c0_12 = arith.constant 0 : index
    %13 = vector.load %arg17[%c0_11, %c0_12] : memref<32x4xf32, #tpu.memory_space<vmem>>, vector<32x4xf32>
    %cst_13 = arith.constant 0.000000e+00 : f32
    %14 = vector.shape_cast %2 : vector<32x1xi1> to vector<32x1xi1>
    %15 = vector.broadcast %14 : vector<32x1xi1> to vector<32x4xi1>
    %16 = vector.broadcast %cst_13 : f32 to vector<32x4xf32>
    %17 = arith.select %15, %13, %16 : vector<32x4xi1>, vector<32x4xf32>
    %18 = arith.truncf %17 : vector<32x4xf32> to vector<32x4xbf16>
    %c0_14 = arith.constant 0 : index
    %c0_15 = arith.constant 0 : index
    %c0_16 = arith.constant 0 : index
    %19 = vector.load %arg6[%c0_14, %c0_15, %c0_16] : memref<3x4x16xbf16, #tpu.memory_space<vmem>>, vector<1x4x16xbf16>
    %20 = vector.shape_cast %19 : vector<1x4x16xbf16> to vector<4x16xbf16>
    %cst_17 = arith.constant dense<0.000000e+00> : vector<32x16xf32>
    %21 = tpu.matmul %18, %20, %cst_17 {dimension_numbers = #tpu.dot_dimension_numbers<[1], [0], [0], [1], [0, 0, 1, 1], [], []>} : vector<32x4xbf16>, vector<4x16xbf16>, vector<32x16xf32> -> vector<32x16xf32>
    %22 = arith.addf %9, %21 : vector<32x16xf32>
    %23 = vector.extract_strided_slice %6 {offsets = [1, 0], sizes = [31, 4], strides = [1, 1]} : vector<32x4xbf16> to vector<31x4xbf16>
    %24 = arith.extf %23 : vector<31x4xbf16> to vector<31x4xf32>
    %c0_18 = arith.constant 0 : index
    %c0_19 = arith.constant 0 : index
    %25 = vector.load %arg17[%c0_18, %c0_19] : memref<32x4xf32, #tpu.memory_space<vmem>>, vector<31x4xf32>
    tpu.vector_store %arg17[%c0_18, %c0_19], %24 {strides = array<i32>} : memref<32x4xf32, #tpu.memory_space<vmem>>, vector<31x4xf32>,
    %c0_20 = arith.constant 0 : index
    %c0_21 = arith.constant 0 : index
    %26 = vector.load %arg17[%c0_20, %c0_21] : memref<32x4xf32, #tpu.memory_space<vmem>>, vector<32x4xf32>
    %cst_22 = arith.constant 0.000000e+00 : f32
    %27 = vector.shape_cast %5 : vector<32x1xi1> to vector<32x1xi1>
    %28 = vector.broadcast %27 : vector<32x1xi1> to vector<32x4xi1>
    %29 = vector.broadcast %cst_22 : f32 to vector<32x4xf32>
    %30 = arith.select %28, %26, %29 : vector<32x4xi1>, vector<32x4xf32>
    %31 = arith.truncf %30 : vector<32x4xf32> to vector<32x4xbf16>
    %c2 = arith.constant 2 : index
    %c0_23 = arith.constant 0 : index
    %c0_24 = arith.constant 0 : index
    %32 = vector.load %arg6[%c2, %c0_23, %c0_24] : memref<3x4x16xbf16, #tpu.memory_space<vmem>>, vector<1x4x16xbf16>
    %33 = vector.shape_cast %32 : vector<1x4x16xbf16> to vector<4x16xbf16>
    %cst_25 = arith.constant dense<0.000000e+00> : vector<32x16xf32>
    %34 = tpu.matmul %31, %33, %cst_25 {dimension_numbers = #tpu.dot_dimension_numbers<[1], [0], [0], [1], [0, 0, 1, 1], [], []>} : vector<32x4xbf16>, vector<4x16xbf16>, vector<32x16xf32> -> vector<32x16xf32>
    %35 = arith.addf %22, %34 : vector<32x16xf32>
    %c0_26 = arith.constant 0 : index
    %c0_27 = arith.constant 0 : index
    %36 = vector.load %arg7[%c0_26, %c0_27] : memref<1x16xf32, #tpu.memory_space<vmem>>, vector<1x16xf32>
    %37 = vector.broadcast %36 : vector<1x16xf32> to vector<32x16xf32>
    %38 = arith.mulf %35, %37 : vector<32x16xf32>
    %c0_28 = arith.constant 0 : index
    %c0_29 = arith.constant 0 : index
    %39 = vector.load %arg8[%c0_28, %c0_29] : memref<1x16xf32, #tpu.memory_space<vmem>>, vector<1x16xf32>
    %40 = vector.broadcast %39 : vector<1x16xf32> to vector<32x16xf32>
    %41 = arith.addf %38, %40 : vector<32x16xf32>
    %42 = arith.negf %41 : vector<32x16xf32>
    %43 = math.exp %42 : vector<32x16xf32>
    %cst_30 = arith.constant 1.000000e+00 : f32
    %44 = vector.broadcast %cst_30 : f32 to vector<32x16xf32>
    %45 = arith.addf %44, %43 : vector<32x16xf32>
    %46 = arith.divf %44, %45 : vector<32x16xf32>
    %47 = arith.mulf %41, %46 : vector<32x16xf32>
    %48 = arith.truncf %47 : vector<32x16xf32> to vector<32x16xbf16>
    %c1_31 = arith.constant 1 : index
    %c0_32 = arith.constant 0 : index
    %c0_33 = arith.constant 0 : index
    %49 = vector.load %arg9[%c1_31, %c0_32, %c0_33] : memref<3x16x32xbf16, #tpu.memory_space<vmem>>, vector<1x16x32xbf16>
    %50 = vector.shape_cast %49 : vector<1x16x32xbf16> to vector<16x32xbf16>
    %cst_34 = arith.constant dense<0.000000e+00> : vector<32x32xf32>
    %51 = tpu.matmul %48, %50, %cst_34 {dimension_numbers = #tpu.dot_dimension_numbers<[1], [0], [0], [1], [0, 0, 1, 1], [], []>} : vector<32x16xbf16>, vector<16x32xbf16>, vector<32x32xf32> -> vector<32x32xf32>
    %52 = vector.extract_strided_slice %48 {offsets = [0, 0], sizes = [31, 16], strides = [1, 1]} : vector<32x16xbf16> to vector<31x16xbf16>
    %53 = arith.extf %52 : vector<31x16xbf16> to vector<31x16xf32>
    %c1_35 = arith.constant 1 : index
    %c0_36 = arith.constant 0 : index
    %54 = vector.load %arg18[%c1_35, %c0_36] : memref<32x16xf32, #tpu.memory_space<vmem>>, vector<31x16xf32>
    tpu.vector_store %arg18[%c1_35, %c0_36], %53 {strides = array<i32>} : memref<32x16xf32, #tpu.memory_space<vmem>>, vector<31x16xf32>,
    %c0_37 = arith.constant 0 : index
    %c0_38 = arith.constant 0 : index
    %55 = vector.load %arg18[%c0_37, %c0_38] : memref<32x16xf32, #tpu.memory_space<vmem>>, vector<32x16xf32>
    %cst_39 = arith.constant 0.000000e+00 : f32
    %56 = vector.shape_cast %2 : vector<32x1xi1> to vector<32x1xi1>
    %57 = vector.broadcast %56 : vector<32x1xi1> to vector<32x16xi1>
    %58 = vector.broadcast %cst_39 : f32 to vector<32x16xf32>
    %59 = arith.select %57, %55, %58 : vector<32x16xi1>, vector<32x16xf32>
    %60 = arith.truncf %59 : vector<32x16xf32> to vector<32x16xbf16>
    %c0_40 = arith.constant 0 : index
    %c0_41 = arith.constant 0 : index
    %c0_42 = arith.constant 0 : index
    %61 = vector.load %arg9[%c0_40, %c0_41, %c0_42] : memref<3x16x32xbf16, #tpu.memory_space<vmem>>, vector<1x16x32xbf16>
    %62 = vector.shape_cast %61 : vector<1x16x32xbf16> to vector<16x32xbf16>
    %cst_43 = arith.constant dense<0.000000e+00> : vector<32x32xf32>
    %63 = tpu.matmul %60, %62, %cst_43 {dimension_numbers = #tpu.dot_dimension_numbers<[1], [0], [0], [1], [0, 0, 1, 1], [], []>} : vector<32x16xbf16>, vector<16x32xbf16>, vector<32x32xf32> -> vector<32x32xf32>
    %64 = arith.addf %51, %63 : vector<32x32xf32>
    %65 = vector.extract_strided_slice %48 {offsets = [1, 0], sizes = [31, 16], strides = [1, 1]} : vector<32x16xbf16> to vector<31x16xbf16>
    %66 = arith.extf %65 : vector<31x16xbf16> to vector<31x16xf32>
    %c0_44 = arith.constant 0 : index
    %c0_45 = arith.constant 0 : index
    %67 = vector.load %arg18[%c0_44, %c0_45] : memref<32x16xf32, #tpu.memory_space<vmem>>, vector<31x16xf32>
    tpu.vector_store %arg18[%c0_44, %c0_45], %66 {strides = array<i32>} : memref<32x16xf32, #tpu.memory_space<vmem>>, vector<31x16xf32>,
    %c0_46 = arith.constant 0 : index
    %c0_47 = arith.constant 0 : index
    %68 = vector.load %arg18[%c0_46, %c0_47] : memref<32x16xf32, #tpu.memory_space<vmem>>, vector<32x16xf32>
    %cst_48 = arith.constant 0.000000e+00 : f32
    %69 = vector.shape_cast %5 : vector<32x1xi1> to vector<32x1xi1>
    %70 = vector.broadcast %69 : vector<32x1xi1> to vector<32x16xi1>
    %71 = vector.broadcast %cst_48 : f32 to vector<32x16xf32>
    %72 = arith.select %70, %68, %71 : vector<32x16xi1>, vector<32x16xf32>
    %73 = arith.truncf %72 : vector<32x16xf32> to vector<32x16xbf16>
    %c2_49 = arith.constant 2 : index
    %c0_50 = arith.constant 0 : index
    %c0_51 = arith.constant 0 : index
    %74 = vector.load %arg9[%c2_49, %c0_50, %c0_51] : memref<3x16x32xbf16, #tpu.memory_space<vmem>>, vector<1x16x32xbf16>
    %75 = vector.shape_cast %74 : vector<1x16x32xbf16> to vector<16x32xbf16>
    %cst_52 = arith.constant dense<0.000000e+00> : vector<32x32xf32>
    %76 = tpu.matmul %73, %75, %cst_52 {dimension_numbers = #tpu.dot_dimension_numbers<[1], [0], [0], [1], [0, 0, 1, 1], [], []>} : vector<32x16xbf16>, vector<16x32xbf16>, vector<32x32xf32> -> vector<32x32xf32>
    %77 = arith.addf %64, %76 : vector<32x32xf32>
    %c0_53 = arith.constant 0 : index
    %c0_54 = arith.constant 0 : index
    %78 = vector.load %arg10[%c0_53, %c0_54] : memref<1x32xf32, #tpu.memory_space<vmem>>, vector<1x32xf32>
    %79 = vector.broadcast %78 : vector<1x32xf32> to vector<32x32xf32>
    %80 = arith.mulf %77, %79 : vector<32x32xf32>
    %c0_55 = arith.constant 0 : index
    %c0_56 = arith.constant 0 : index
    %81 = vector.load %arg11[%c0_55, %c0_56] : memref<1x32xf32, #tpu.memory_space<vmem>>, vector<1x32xf32>
    %82 = vector.broadcast %81 : vector<1x32xf32> to vector<32x32xf32>
    %83 = arith.addf %80, %82 : vector<32x32xf32>
    %84 = arith.negf %83 : vector<32x32xf32>
    %85 = math.exp %84 : vector<32x32xf32>
    %cst_57 = arith.constant 1.000000e+00 : f32
    %86 = vector.broadcast %cst_57 : f32 to vector<32x32xf32>
    %87 = arith.addf %86, %85 : vector<32x32xf32>
    %88 = arith.divf %86, %87 : vector<32x32xf32>
    %89 = arith.mulf %83, %88 : vector<32x32xf32>
    %c0_58 = arith.constant 0 : index
    %c0_59 = arith.constant 0 : index
    %90 = vector.load %arg5[%c0_58, %c0_59] : memref<2x32xf32, #tpu.memory_space<vmem>>, vector<2x32xf32>
    %cst_60 = arith.constant dense<0.000000e+00> : vector<2x32xf32>
    %91 = tpu.matmul %90, %89, %cst_60 {dimension_numbers = #tpu.dot_dimension_numbers<[1], [0], [0], [1], [0, 0, 1, 1], [], []>} : vector<2x32xf32>, vector<32x32xf32>, vector<2x32xf32> -> vector<2x32xf32>
    %c0_61 = arith.constant 0 : index
    %c0_62 = arith.constant 0 : index
    %92 = vector.load %arg2[%c0_61, %c0_62] : memref<2x1xf32, #tpu.memory_space<vmem>>, vector<2x1xf32>
    %c0_63 = arith.constant 0 : index
    %c0_64 = arith.constant 0 : index
    %93 = vector.load %arg12[%c0_63, %c0_64] : memref<1x32xf32, #tpu.memory_space<vmem>>, vector<1x32xf32>
    %94 = vector.broadcast %92 : vector<2x1xf32> to vector<2x32xf32>
    %95 = vector.broadcast %93 : vector<1x32xf32> to vector<2x32xf32>
    %96 = arith.mulf %94, %95 : vector<2x32xf32>
    %c0_65 = arith.constant 0 : index
    %c0_66 = arith.constant 0 : index
    %97 = vector.load %arg13[%c0_65, %c0_66] : memref<1x32xf32, #tpu.memory_space<vmem>>, vector<1x32xf32>
    %98 = vector.broadcast %97 : vector<1x32xf32> to vector<2x32xf32>
    %99 = arith.addf %96, %98 : vector<2x32xf32>
    %100 = arith.negf %99 : vector<2x32xf32>
    %101 = math.exp %100 : vector<2x32xf32>
    %cst_67 = arith.constant 1.000000e+00 : f32
    %102 = vector.broadcast %cst_67 : f32 to vector<2x32xf32>
    %103 = arith.addf %102, %101 : vector<2x32xf32>
    %104 = arith.divf %102, %103 : vector<2x32xf32>
    %105 = arith.mulf %99, %104 : vector<2x32xf32>
    %c0_68 = arith.constant 0 : index
    %c0_69 = arith.constant 0 : index
    %106 = vector.load %arg14[%c0_68, %c0_69] : memref<32x32xf32, #tpu.memory_space<vmem>>, vector<32x32xf32>
    %cst_70 = arith.constant dense<0.000000e+00> : vector<2x32xf32>
    %107 = tpu.matmul %105, %106, %cst_70 {dimension_numbers = #tpu.dot_dimension_numbers<[1], [0], [0], [1], [0, 0, 1, 1], [], []>} : vector<2x32xf32>, vector<32x32xf32>, vector<2x32xf32> -> vector<2x32xf32>
    %c0_71 = arith.constant 0 : index
    %c0_72 = arith.constant 0 : index
    %108 = vector.load %arg15[%c0_71, %c0_72] : memref<1x32xf32, #tpu.memory_space<vmem>>, vector<1x32xf32>
    %109 = vector.broadcast %108 : vector<1x32xf32> to vector<2x32xf32>
    %110 = arith.addf %107, %109 : vector<2x32xf32>
    %111 = arith.addf %91, %110 : vector<2x32xf32>
    %c0_73 = arith.constant 0 : index
    %c0_74 = arith.constant 0 : index
    %112 = vector.load %arg16[%c0_73, %c0_74] : memref<2x32xf32, #tpu.memory_space<vmem>>, vector<2x32xf32>
    tpu.vector_store %arg16[%c0_73, %c0_74], %111 {strides = array<i32>} : memref<2x32xf32, #tpu.memory_space<vmem>>, vector<2x32xf32>,
    return
  }
  func.func @transform_0(%arg0: i32) -> (i32, i32) {
    %c0_i32 = arith.constant 0 : i32
    %c0_i32_0 = arith.constant 0 : i32
    return %arg0, %c0_i32 : i32, i32
  }
  func.func @transform_1(%arg0: i32) -> (i32, i32) {
    %c0_i32 = arith.constant 0 : i32
    %c0_i32_0 = arith.constant 0 : i32
    return %arg0, %c0_i32 : i32, i32
  }
  func.func @transform_2(%arg0: i32) -> (i32, i32) {
    %c0_i32 = arith.constant 0 : i32
    %c0_i32_0 = arith.constant 0 : i32
    %c0_i32_1 = arith.constant 0 : i32
    return %c0_i32, %c0_i32_0 : i32, i32
  }
  func.func @transform_3(%arg0: i32) -> (i32, i32) {
    %c0_i32 = arith.constant 0 : i32
    %c0_i32_0 = arith.constant 0 : i32
    %c0_i32_1 = arith.constant 0 : i32
    return %c0_i32, %c0_i32_0 : i32, i32
  }
  func.func @transform_4(%arg0: i32) -> (i32, i32) {
    %c0_i32 = arith.constant 0 : i32
    %c0_i32_0 = arith.constant 0 : i32
    %c0_i32_1 = arith.constant 0 : i32
    return %c0_i32, %c0_i32_0 : i32, i32
  }
  func.func @transform_5(%arg0: i32) -> (i32, i32, i32) {
    %c0_i32 = arith.constant 0 : i32
    %c0_i32_0 = arith.constant 0 : i32
    %c0_i32_1 = arith.constant 0 : i32
    %c0_i32_2 = arith.constant 0 : i32
    return %c0_i32, %c0_i32_0, %c0_i32_1 : i32, i32, i32
  }
  func.func @transform_6(%arg0: i32) -> (i32, i32) {
    %c0_i32 = arith.constant 0 : i32
    %c0_i32_0 = arith.constant 0 : i32
    %c0_i32_1 = arith.constant 0 : i32
    return %c0_i32, %c0_i32_0 : i32, i32
  }
  func.func @transform_7(%arg0: i32) -> (i32, i32) {
    %c0_i32 = arith.constant 0 : i32
    %c0_i32_0 = arith.constant 0 : i32
    %c0_i32_1 = arith.constant 0 : i32
    return %c0_i32, %c0_i32_0 : i32, i32
  }
  func.func @transform_8(%arg0: i32) -> (i32, i32, i32) {
    %c0_i32 = arith.constant 0 : i32
    %c0_i32_0 = arith.constant 0 : i32
    %c0_i32_1 = arith.constant 0 : i32
    %c0_i32_2 = arith.constant 0 : i32
    return %c0_i32, %c0_i32_0, %c0_i32_1 : i32, i32, i32
  }
  func.func @transform_9(%arg0: i32) -> (i32, i32) {
    %c0_i32 = arith.constant 0 : i32
    %c0_i32_0 = arith.constant 0 : i32
    %c0_i32_1 = arith.constant 0 : i32
    return %c0_i32, %c0_i32_0 : i32, i32
  }
  func.func @transform_10(%arg0: i32) -> (i32, i32) {
    %c0_i32 = arith.constant 0 : i32
    %c0_i32_0 = arith.constant 0 : i32
    %c0_i32_1 = arith.constant 0 : i32
    return %c0_i32, %c0_i32_0 : i32, i32
  }
  func.func @transform_11(%arg0: i32) -> (i32, i32) {
    %c0_i32 = arith.constant 0 : i32
    %c0_i32_0 = arith.constant 0 : i32
    %c0_i32_1 = arith.constant 0 : i32
    return %c0_i32, %c0_i32_0 : i32, i32
  }
  func.func @transform_12(%arg0: i32) -> (i32, i32) {
    %c0_i32 = arith.constant 0 : i32
    %c0_i32_0 = arith.constant 0 : i32
    %c0_i32_1 = arith.constant 0 : i32
    return %c0_i32, %c0_i32_0 : i32, i32
  }
  func.func @transform_13(%arg0: i32) -> (i32, i32) {
    %c0_i32 = arith.constant 0 : i32
    %c0_i32_0 = arith.constant 0 : i32
    %c0_i32_1 = arith.constant 0 : i32
    return %c0_i32, %c0_i32_0 : i32, i32
  }
  func.func @transform_14(%arg0: i32) -> (i32, i32) {
    %c0_i32 = arith.constant 0 : i32
    %c0_i32_0 = arith.constant 0 : i32
    %c0_i32_1 = arith.constant 0 : i32
    return %c0_i32, %c0_i32_0 : i32, i32
  }
  func.func @transform_15(%arg0: i32) -> (i32, i32) {
    %c0_i32 = arith.constant 0 : i32
    %c0_i32_0 = arith.constant 0 : i32
    return %arg0, %c0_i32 : i32, i32
  }
}

</mosaic_0001>

<llo_original>
// kernel: tpu_custom_call.1
$region0: #{tpu_custom_call.1}
  #allocation0 [shape = 'u32[]', space=smem, size = 0x4, offset = 0x4, fixed_abs, tag = 'smem constant byte address 0x4 - core index']
  #allocation1 [shape = 'u32[144,128]{1,0:T(1,128)}', space=vmem, size = 0x12000, scoped, tag = 'internal scratch']
  #allocation2 [shape = 'f32[32,4]{1,0:T(8,128)}', space=vmem, size = 0x4000, scoped, tag = 'scratch operand']
  #allocation3 [shape = 'f32[32,16]{1,0:T(8,128)}', space=vmem, size = 0x4000, scoped, tag = 'scratch operand']
  %s0 = inlined_call_operand.vmem [shape: bf16[32,4], index: 0, kind: input, shape index: {}]
  %s1 = inlined_call_operand.vmem [shape: f32[2,1], index: 1, kind: input, shape index: {}]
  %s2 = inlined_call_operand.vmem [shape: f32[32,1], index: 2, kind: input, shape index: {}]
  %s3 = inlined_call_operand.vmem [shape: f32[32,1], index: 3, kind: input, shape index: {}]
  %s4 = inlined_call_operand.vmem [shape: f32[2,32], index: 4, kind: input, shape index: {}]
  %s5 = inlined_call_operand.vmem [shape: bf16[3,4,16], index: 5, kind: input, shape index: {}]
  %s6 = inlined_call_operand.vmem [shape: f32[1,16], index: 6, kind: input, shape index: {}]
  %s7 = inlined_call_operand.vmem [shape: f32[1,16], index: 7, kind: input, shape index: {}]
  %s8 = inlined_call_operand.vmem [shape: bf16[3,16,32], index: 8, kind: input, shape index: {}]
  %s9 = inlined_call_operand.vmem [shape: f32[1,32], index: 9, kind: input, shape index: {}]
  %s10 = inlined_call_operand.vmem [shape: f32[1,32], index: 10, kind: input, shape index: {}]
  %s11 = inlined_call_operand.vmem [shape: f32[1,32], index: 11, kind: input, shape index: {}]
  %s12 = inlined_call_operand.vmem [shape: f32[1,32], index: 12, kind: input, shape index: {}]
  %s13 = inlined_call_operand.vmem [shape: f32[32,32], index: 13, kind: input, shape index: {}]
  %s14 = inlined_call_operand.vmem [shape: f32[1,32], index: 14, kind: input, shape index: {}]
  %s15 = inlined_call_operand.hbm [shape: f32[2,32], index: 15, kind: output, shape index: {}]
  %s16 = sld [smem:[#allocation0]]
  $region70: #{tpu_custom_call.1} parent=0
    _
  %s18 = ssub.s32 1, %s16
  %s19 = scalar_select 0, %s18, %s16
  $region1: #{tpu_custom_call.1} parent=0
    #allocation4 [shape = 'u8[1024]{0}', space=vmem, size = 0x400, scoped, tag = 'output window, operand 0, single buffered']
    #allocation5 [shape = 's32[1]{0}', space=sflag, size = 0x4, scoped, tag = 'scoped memory for tpu_custom_call.1']
    %20 = vsyncpa [#allocation5], 0
    // Predicated region
    $region2: #{tpu_custom_call.1} parent=1 // pred_check
      _
    $region3: #{tpu_custom_call.1} parent=1 // pred_check_branch
      %22 = sbr.rel (0) target = $region5
    $region4: #{tpu_custom_call.1} parent=1 // pred_region
      _
    $region5: #{tpu_custom_call.1} parent=1 // pred_fallthru
      _
    // Predicated region
    $region6: #{tpu_custom_call.1} parent=1 // pred_check
      _
    $region7: #{tpu_custom_call.1} parent=1 // pred_check_branch
      %24 = sbr.rel (0) target = $region9
    $region8: #{tpu_custom_call.1} parent=1 // pred_region
      _
    $region9: #{tpu_custom_call.1} parent=1 // pred_fallthru
      _
    // Predicated region
    $region10: #{tpu_custom_call.1} parent=1 // pred_check
      _
    $region11: #{tpu_custom_call.1} parent=1 // pred_check_branch
      %26 = sbr.rel (0) target = $region13
    $region12: #{tpu_custom_call.1} parent=1 // pred_region
      _
    $region13: #{tpu_custom_call.1} parent=1 // pred_fallthru
      _
    // Predicated region
    $region14: #{tpu_custom_call.1} parent=1 // pred_check
      _
    $region15: #{tpu_custom_call.1} parent=1 // pred_check_branch
      %28 = sbr.rel (0) target = $region17
    $region16: #{tpu_custom_call.1} parent=1 // pred_region
      _
    $region17: #{tpu_custom_call.1} parent=1 // pred_fallthru
      _
    // Predicated region
    $region18: #{tpu_custom_call.1} parent=1 // pred_check
      _
    $region19: #{tpu_custom_call.1} parent=1 // pred_check_branch
      %30 = sbr.rel (0) target = $region21
    $region20: #{tpu_custom_call.1} parent=1 // pred_region
      _
    $region21: #{tpu_custom_call.1} parent=1 // pred_fallthru
      _
    // Predicated region
    $region22: #{tpu_custom_call.1} parent=1 // pred_check
      _
    $region23: #{tpu_custom_call.1} parent=1 // pred_check_branch
      %32 = sbr.rel (0) target = $region25
    $region24: #{tpu_custom_call.1} parent=1 // pred_region
      _
    $region25: #{tpu_custom_call.1} parent=1 // pred_fallthru
      _
    // Predicated region
    $region26: #{tpu_custom_call.1} parent=1 // pred_check
      _
    $region27: #{tpu_custom_call.1} parent=1 // pred_check_branch
      %34 = sbr.rel (0) target = $region29
    $region28: #{tpu_custom_call.1} parent=1 // pred_region
      _
    $region29: #{tpu_custom_call.1} parent=1 // pred_fallthru
      _
    // Predicated region
    $region30: #{tpu_custom_call.1} parent=1 // pred_check
      _
    $region31: #{tpu_custom_call.1} parent=1 // pred_check_branch
      %36 = sbr.rel (0) target = $region33
    $region32: #{tpu_custom_call.1} parent=1 // pred_region
      _
    $region33: #{tpu_custom_call.1} parent=1 // pred_fallthru
      _
    // Predicated region
    $region34: #{tpu_custom_call.1} parent=1 // pred_check
      _
    $region35: #{tpu_custom_call.1} parent=1 // pred_check_branch
      %38 = sbr.rel (0) target = $region37
    $region36: #{tpu_custom_call.1} parent=1 // pred_region
      _
    $region37: #{tpu_custom_call.1} parent=1 // pred_fallthru
      _
    // Predicated region
    $region38: #{tpu_custom_call.1} parent=1 // pred_check
      _
    $region39: #{tpu_custom_call.1} parent=1 // pred_check_branch
      %40 = sbr.rel (0) target = $region41
    $region40: #{tpu_custom_call.1} parent=1 // pred_region
      _
    $region41: #{tpu_custom_call.1} parent=1 // pred_fallthru
      _
    // Predicated region
    $region42: #{tpu_custom_call.1} parent=1 // pred_check
      _
    $region43: #{tpu_custom_call.1} parent=1 // pred_check_branch
      %42 = sbr.rel (0) target = $region45
    $region44: #{tpu_custom_call.1} parent=1 // pred_region
      _
    $region45: #{tpu_custom_call.1} parent=1 // pred_fallthru
      _
    // Predicated region
    $region46: #{tpu_custom_call.1} parent=1 // pred_check
      _
    $region47: #{tpu_custom_call.1} parent=1 // pred_check_branch
      %44 = sbr.rel (0) target = $region49
    $region48: #{tpu_custom_call.1} parent=1 // pred_region
      _
    $region49: #{tpu_custom_call.1} parent=1 // pred_fallthru
      _
    // Predicated region
    $region50: #{tpu_custom_call.1} parent=1 // pred_check
      _
    $region51: #{tpu_custom_call.1} parent=1 // pred_check_branch
      %46 = sbr.rel (0) target = $region53
    $region52: #{tpu_custom_call.1} parent=1 // pred_region
      _
    $region53: #{tpu_custom_call.1} parent=1 // pred_fallthru
      _
    // Predicated region
    $region54: #{tpu_custom_call.1} parent=1 // pred_check
      _
    $region55: #{tpu_custom_call.1} parent=1 // pred_check_branch
      %48 = sbr.rel (0) target = $region57
    $region56: #{tpu_custom_call.1} parent=1 // pred_region
      _
    $region57: #{tpu_custom_call.1} parent=1 // pred_fallthru
      _
    // Predicated region
    $region58: #{tpu_custom_call.1} parent=1 // pred_check
      _
    $region59: #{tpu_custom_call.1} parent=1 // pred_check_branch
      %50 = sbr.rel (0) target = $region61
    $region60: #{tpu_custom_call.1} parent=1 // pred_region
      _
    $region61: #{tpu_custom_call.1} parent=1 // pred_fallthru
      _
    %v52 = vld [vmem:[%s2] sm:$0xff]
    %v53 = vld [vmem:[%s2 + $0x8] sm:$0xff]
    %v54 = vld [vmem:[%s2 + $0x10] sm:$0xff]
    %v55 = vld [vmem:[%s2 + $0x18] sm:$0xff]
    %vm56 = vcmp.gt.f32.partialorder %v52, 0.5
    %vm57 = vcmp.gt.f32.partialorder %v53, 0.5
    %vm58 = vcmp.gt.f32.partialorder %v54, 0.5
    %vm59 = vcmp.gt.f32.partialorder %v55, 0.5
    %v60 = vld [vmem:[%s3] sm:$0xff]
    %v61 = vld [vmem:[%s3 + $0x8] sm:$0xff]
    %v62 = vld [vmem:[%s3 + $0x10] sm:$0xff]
    %v63 = vld [vmem:[%s3 + $0x18] sm:$0xff]
    %vm64 = vcmp.gt.f32.partialorder %v60, 0.5
    %vm65 = vcmp.gt.f32.partialorder %v61, 0.5
    %vm66 = vcmp.gt.f32.partialorder %v62, 0.5
    %vm67 = vcmp.gt.f32.partialorder %v63, 0.5
    %v68 = vld [vmem:[%s0] sm:$0xf]
    %v69 = vld [vmem:[%s0 + $0x4] sm:$0xf]
    %v70 = vld [vmem:[%s0 + $0x8] sm:$0xf]
    %v71 = vld [vmem:[%s0 + $0xc] sm:$0xf]
    %s72 = scalar_lea.vmem %s5, 2
    %v73 = vld [vmem:[%s72] sm:$0x3]
    %v74 = vunpack.c.l.bf16 %v68
    %v75 = vunpack.c.l.bf16 %v69
    %v76 = vunpack.c.l.bf16 %v70
    %v77 = vunpack.c.l.bf16 %v71
    %vm78 = vcmask 31744
    %79 = vst.msk [vmem:[#allocation2 + $0x1] sm:$0xff] %vm78, %v74
    %80 = vst.msk [vmem:[#allocation2 + $0x9] sm:$0xff] %vm78, %v75
    %81 = vst.msk [vmem:[#allocation2 + $0x11] sm:$0xff] %vm78, %v76
    %vm82 = vcmask 30720
    %83 = vst.msk [vmem:[#allocation2 + $0x19] sm:$0x7f] %vm82, %v77
    %v84 = vld [vmem:[#allocation2] sm:$0xff]
    %v85 = vld [vmem:[#allocation2 + $0x8] sm:$0xff]
    %v86 = vld [vmem:[#allocation2 + $0x10] sm:$0xff]
    %v87 = vld [vmem:[#allocation2 + $0x18] sm:$0xff]
    %v88 = vsel %vm56, 1, 0
    %v89 = vsel %vm57, 1, 0
    %v90 = vsel %vm58, 1, 0
    %v91 = vsel %vm59, 1, 0
    %92 = vset.pattern.permute.xlu0 0
    %93 = vperm.xlu0 %92, %v88
    %v94 = vpop.permute.xlu0 %93
    %95 = vset.pattern.permute.xlu0 0
    %96 = vperm.xlu0 %95, %v89
    %v97 = vpop.permute.xlu0 %96
    %98 = vset.pattern.permute.xlu0 0
    %99 = vperm.xlu0 %98, %v90
    %v100 = vpop.permute.xlu0 %99
    %101 = vset.pattern.permute.xlu0 0
    %102 = vperm.xlu0 %101, %v91
    %v103 = vpop.permute.xlu0 %102
    %vm104 = vcmp.eq.s32.totalorder %v94, 1
    %vm105 = vcmp.eq.s32.totalorder %v97, 1
    %vm106 = vcmp.eq.s32.totalorder %v100, 1
    %vm107 = vcmp.eq.s32.totalorder %v103, 1
    %v108 = vsel %vm104, %v84, 0.0
    %v109 = vsel %vm105, %v85, 0.0
    %v110 = vsel %vm106, %v86, 0.0
    %v111 = vsel %vm107, %v87, 0.0
    %v112 = vpack.c.bf16 %v109, %v108
    %v113 = vpack.c.bf16 %v111, %v110
    %v114 = vld [vmem:[%s5] sm:$0x3]
    %v116 = vsel %vm78, %v112, 0
    %v119 = vsel %vm78, %v113, 0
    %vm121 = vcmask 1041408
    %v123 = vsel %vm121, %v114, 0
    %125 = vmatprep.subr.bf16.mxu0 0
    %126 = vmatpush1.bf16.msra.mxu0 %v123
    %127 = vmatprep.subr.bf16.mxu0 0
    %128 = vmatpush1.bf16.msra.mxu0 0
    %129 = vmatprep.subr.bf16.mxu0 0
    %130 = vmatpush1.bf16.msra.mxu0 0
    %131 = vmatprep.subr.bf16.mxu0 0
    %132 = vmatpush1.bf16.msra.mxu0 0
    %133 = vmatprep.subr.bf16.mxu0 0
    %134 = vmatpush1.bf16.msra.mxu0 0
    %135 = vmatprep.subr.bf16.mxu0 0
    %136 = vmatpush1.bf16.msra.mxu0 0
    %137 = vmatprep.subr.bf16.mxu0 0
    %138 = vmatpush1.bf16.msra.mxu0 0
    %139 = vmatprep.subr.bf16.mxu0 0
    %140 = vmatpush1.bf16.msra.mxu0 0
    %141 = vmatprep.subr.bf16.mxu0 0
    %142 = vmatpush1.bf16.msra.mxu0 0
    %143 = vmatprep.subr.bf16.mxu0 0
    %144 = vmatpush1.bf16.msra.mxu0 0
    %145 = vmatprep.subr.bf16.mxu0 0
    %146 = vmatpush1.bf16.msra.mxu0 0
    %147 = vmatprep.subr.bf16.mxu0 0
    %148 = vmatpush1.bf16.msra.mxu0 0
    %149 = vmatprep.subr.bf16.mxu0 0
    %150 = vmatpush1.bf16.msra.mxu0 0
    %151 = vmatprep.subr.bf16.mxu0 0
    %152 = vmatpush1.bf16.msra.mxu0 0
    %153 = vmatprep.subr.bf16.mxu0 0
    %154 = vmatpush1.bf16.msra.mxu0 0
    %155 = vmatprep.subr.bf16.mxu0 0
    %156 = vmatpush1.bf16.msra.mxu0 0
    %157 = vmatprep.mubr.bf16.mxu0 0
    %158 = vmatmul.mubr.bf16.gmra.mrb[0].mxu0 %v116
    %v159 = vpop.f32.mrb[0].mxu0
    %v160 = vadd.f32 0.0, %v159
    %v161 = vpop.f32.mrb[0].mxu0
    %v162 = vpop.f32.mrb[0].mxu0
    %v163 = vadd.f32 0.0, %v162
    %v164 = vpop.f32.mrb[0].mxu0
    %165 = vmatprep.mubr.bf16.mxu0 0
    %166 = vmatmul.mubr.bf16.gmra.mrb[0].mxu0 %v119
    %v167 = vpop.f32.mrb[0].mxu0
    %v168 = vadd.f32 0.0, %v167
    %v169 = vpop.f32.mrb[0].mxu0
    %v170 = vpop.f32.mrb[0].mxu0
    %v171 = vadd.f32 0.0, %v170
    %v172 = vpop.f32.mrb[0].mxu0
    %173 = vdwg.mxu0
    %v178 = vunpack.c.l.b16 %v68
    %v179 = vunpack.c.l.b16 %v69
    %v180 = vunpack.c.l.b16 %v70
    %v181 = vunpack.c.l.b16 %v71
    %v182 = vpack.c.b16 %v179, %v178
    %v183 = vpack.c.b16 %v181, %v180
    %v185 = vsel %vm78, %v182, 0
    %v188 = vsel %vm78, %v183, 0
    %v191 = vsel %vm121, %v73, 0
    %193 = vmatprep.subr.bf16.mxu0 0
    %194 = vmatpush1.bf16.msra.mxu0 %v191
    %195 = vmatprep.subr.bf16.mxu0 0
    %196 = vmatpush1.bf16.msra.mxu0 0
    %197 = vmatprep.subr.bf16.mxu0 0
    %198 = vmatpush1.bf16.msra.mxu0 0
    %199 = vmatprep.subr.bf16.mxu0 0
    %200 = vmatpush1.bf16.msra.mxu0 0
    %201 = vmatprep.subr.bf16.mxu0 0
    %202 = vmatpush1.bf16.msra.mxu0 0
    %203 = vmatprep.subr.bf16.mxu0 0
    %204 = vmatpush1.bf16.msra.mxu0 0
    %205 = vmatprep.subr.bf16.mxu0 0
    %206 = vmatpush1.bf16.msra.mxu0 0
    %207 = vmatprep.subr.bf16.mxu0 0
    %208 = vmatpush1.bf16.msra.mxu0 0
    %209 = vmatprep.subr.bf16.mxu0 0
    %210 = vmatpush1.bf16.msra.mxu0 0
    %211 = vmatprep.subr.bf16.mxu0 0
    %212 = vmatpush1.bf16.msra.mxu0 0
    %213 = vmatprep.subr.bf16.mxu0 0
    %214 = vmatpush1.bf16.msra.mxu0 0
    %215 = vmatprep.subr.bf16.mxu0 0
    %216 = vmatpush1.bf16.msra.mxu0 0
    %217 = vmatprep.subr.bf16.mxu0 0
    %218 = vmatpush1.bf16.msra.mxu0 0
    %219 = vmatprep.subr.bf16.mxu0 0
    %220 = vmatpush1.bf16.msra.mxu0 0
    %221 = vmatprep.subr.bf16.mxu0 0
    %222 = vmatpush1.bf16.msra.mxu0 0
    %223 = vmatprep.subr.bf16.mxu0 0
    %224 = vmatpush1.bf16.msra.mxu0 0
    %225 = vmatprep.mubr.bf16.mxu0 0
    %226 = vmatmul.mubr.bf16.gmra.mrb[0].mxu0 %v185
    %v227 = vpop.f32.mrb[0].mxu0
    %v228 = vadd.f32 %v160, %v227
    %v229 = vpop.f32.mrb[0].mxu0
    %v230 = vpop.f32.mrb[0].mxu0
    %v231 = vadd.f32 %v163, %v230
    %v232 = vpop.f32.mrb[0].mxu0
    %233 = vmatprep.mubr.bf16.mxu0 0
    %234 = vmatmul.mubr.bf16.gmra.mrb[0].mxu0 %v188
    %v235 = vpop.f32.mrb[0].mxu0
    %v236 = vadd.f32 %v168, %v235
    %v237 = vpop.f32.mrb[0].mxu0
    %v238 = vpop.f32.mrb[0].mxu0
    %v239 = vadd.f32 %v171, %v238
    %v240 = vpop.f32.mrb[0].mxu0
    %241 = vdwg.mxu0
    %vm242 = vcmask 31745
    %243 = vst.msk [vmem:[#allocation2 - $0x1] sm:$0xfe] %vm242, %v74
    %244 = vst.msk [vmem:[#allocation2 + $0x7] sm:$0xff] %vm78, %v75
    %245 = vst.msk [vmem:[#allocation2 + $0xf] sm:$0xff] %vm78, %v76
    %246 = vst.msk [vmem:[#allocation2 + $0x17] sm:$0xff] %vm78, %v77
    %v247 = vld [vmem:[#allocation2] sm:$0xff]
    %v248 = vld [vmem:[#allocation2 + $0x8] sm:$0xff]
    %v249 = vld [vmem:[#allocation2 + $0x10] sm:$0xff]
    %v250 = vld [vmem:[#allocation2 + $0x18] sm:$0xff]
    %v251 = vsel %vm64, 1, 0
    %v252 = vsel %vm65, 1, 0
    %v253 = vsel %vm66, 1, 0
    %v254 = vsel %vm67, 1, 0
    %255 = vset.pattern.permute.xlu0 0
    %256 = vperm.xlu0 %255, %v251
    %v257 = vpop.permute.xlu0 %256
    %258 = vset.pattern.permute.xlu0 0
    %259 = vperm.xlu0 %258, %v252
    %v260 = vpop.permute.xlu0 %259
    %261 = vset.pattern.permute.xlu0 0
    %262 = vperm.xlu0 %261, %v253
    %v263 = vpop.permute.xlu0 %262
    %264 = vset.pattern.permute.xlu0 0
    %265 = vperm.xlu0 %264, %v254
    %v266 = vpop.permute.xlu0 %265
    %vm267 = vcmp.eq.s32.totalorder %v257, 1
    %vm268 = vcmp.eq.s32.totalorder %v260, 1
    %vm269 = vcmp.eq.s32.totalorder %v263, 1
    %vm270 = vcmp.eq.s32.totalorder %v266, 1
    %v271 = vsel %vm267, %v247, 0.0
    %v272 = vsel %vm268, %v248, 0.0
    %v273 = vsel %vm269, %v249, 0.0
    %v274 = vsel %vm270, %v250, 0.0
    %v275 = vpack.c.bf16 %v272, %v271
    %v276 = vpack.c.bf16 %v274, %v273
    %s277 = scalar_lea.vmem %s5, 4
    %v278 = vld [vmem:[%s277] sm:$0x3]
    %v280 = vsel %vm78, %v275, 0
    %v283 = vsel %vm78, %v276, 0
    %v286 = vsel %vm121, %v278, 0
    %288 = vmatprep.subr.bf16.mxu0 0
    %289 = vmatpush1.bf16.msra.mxu0 %v286
    %290 = vmatprep.subr.bf16.mxu0 0
    %291 = vmatpush1.bf16.msra.mxu0 0
    %292 = vmatprep.subr.bf16.mxu0 0
    %293 = vmatpush1.bf16.msra.mxu0 0
    %294 = vmatprep.subr.bf16.mxu0 0
    %295 = vmatpush1.bf16.msra.mxu0 0
    %296 = vmatprep.subr.bf16.mxu0 0
    %297 = vmatpush1.bf16.msra.mxu0 0
    %298 = vmatprep.subr.bf16.mxu0 0
    %299 = vmatpush1.bf16.msra.mxu0 0
    %300 = vmatprep.subr.bf16.mxu0 0
    %301 = vmatpush1.bf16.msra.mxu0 0
    %302 = vmatprep.subr.bf16.mxu0 0
    %303 = vmatpush1.bf16.msra.mxu0 0
    %304 = vmatprep.subr.bf16.mxu0 0
    %305 = vmatpush1.bf16.msra.mxu0 0
    %306 = vmatprep.subr.bf16.mxu0 0
    %307 = vmatpush1.bf16.msra.mxu0 0
    %308 = vmatprep.subr.bf16.mxu0 0
    %309 = vmatpush1.bf16.msra.mxu0 0
    %310 = vmatprep.subr.bf16.mxu0 0
    %311 = vmatpush1.bf16.msra.mxu0 0
    %312 = vmatprep.subr.bf16.mxu0 0
    %313 = vmatpush1.bf16.msra.mxu0 0
    %314 = vmatprep.subr.bf16.mxu0 0
    %315 = vmatpush1.bf16.msra.mxu0 0
    %316 = vmatprep.subr.bf16.mxu0 0
    %317 = vmatpush1.bf16.msra.mxu0 0
    %318 = vmatprep.subr.bf16.mxu0 0
    %319 = vmatpush1.bf16.msra.mxu0 0
    %320 = vmatprep.mubr.bf16.mxu0 0
    %321 = vmatmul.mubr.bf16.gmra.mrb[0].mxu0 %v280
    %v322 = vpop.f32.mrb[0].mxu0
    %v323 = vadd.f32 0.0, %v322
    %v324 = vpop.f32.mrb[0].mxu0
    %v325 = vpop.f32.mrb[0].mxu0
    %v326 = vadd.f32 0.0, %v325
    %v327 = vpop.f32.mrb[0].mxu0
    %328 = vmatprep.mubr.bf16.mxu0 0
    %329 = vmatmul.mubr.bf16.gmra.mrb[0].mxu0 %v283
    %v330 = vpop.f32.mrb[0].mxu0
    %v331 = vadd.f32 0.0, %v330
    %v332 = vpop.f32.mrb[0].mxu0
    %v333 = vpop.f32.mrb[0].mxu0
    %v334 = vadd.f32 0.0, %v333
    %v335 = vpop.f32.mrb[0].mxu0
    %336 = vdwg.mxu0
    %v337 = vadd.f32 %v228, %v323
    %v338 = vadd.f32 %v231, %v326
    %v339 = vadd.f32 %v236, %v331
    %v340 = vadd.f32 %v239, %v334
    %v341 = vld [vmem:[%s6] sm:$0x1]
    %v343 = vlaneseq
    %v344 = vshrl.u32 %v343, 7
    %v345 = vsub.s32 0, %v344
    %v346 = vrot.slane %v341, %v345
    %v348 = vmul.f32 %v337, %v346
    %v349 = vmul.f32 %v338, %v346
    %v350 = vmul.f32 %v339, %v346
    %v351 = vmul.f32 %v340, %v346
    %v352 = vld [vmem:[%s7] sm:$0x1]
    %v354 = vlaneseq
    %v355 = vshrl.u32 %v354, 7
    %v356 = vsub.s32 0, %v355
    %v357 = vrot.slane %v352, %v356
    %v359 = vadd.f32 %v348, %v357
    %v360 = vadd.f32 %v349, %v357
    %v361 = vadd.f32 %v350, %v357
    %v362 = vadd.f32 %v351, %v357
    %v363 = vxor.u32 %v359, 2147483648
    %v364 = vxor.u32 %v360, 2147483648
    %v365 = vxor.u32 %v361, 2147483648
    %v366 = vxor.u32 %v362, 2147483648
    %v367 = vmul.f32 %v363, 1.442695
    %v368 = vpow.pop %v367
    %v369 = vmul.f32 %v364, 1.442695
    %v370 = vpow.pop %v369
    %v371 = vmul.f32 %v365, 1.442695
    %v372 = vpow.pop %v371
    %v373 = vmul.f32 %v366, 1.442695
    %v374 = vpow.pop %v373
    %v375 = vadd.f32 %v368, 1.0
    %v376 = vadd.f32 %v370, 1.0
    %v377 = vadd.f32 %v372, 1.0
    %v378 = vadd.f32 %v374, 1.0
    %v379 = vrcp.pop %v375
    %v380 = vmul.f32 1.0, %v379
    %v381 = vrcp.pop %v376
    %v382 = vmul.f32 1.0, %v381
    %v383 = vrcp.pop %v377
    %v384 = vmul.f32 1.0, %v383
    %v385 = vrcp.pop %v378
    %v386 = vmul.f32 1.0, %v385
    %v387 = vmul.f32 %v359, %v380
    %v388 = vmul.f32 %v360, %v382
    %v389 = vmul.f32 %v361, %v384
    %v390 = vmul.f32 %v362, %v386
    %v391 = vpack.c.bf16 %v388, %v387
    %v392 = vpack.c.bf16 %v390, %v389
    %s393 = scalar_lea.vmem %s8, 8
    %v394 = vld [vmem:[%s393] sm:$0xf]
    %v395 = vld [vmem:[%s393 + $0x4] sm:$0xf]
    %v396 = vunpack.c.l.bf16 %v391
    %v397 = vunpack.c.h.bf16 %v391
    %v398 = vunpack.c.l.bf16 %v392
    %v399 = vunpack.c.h.bf16 %v392
    %vm400 = vcmask 130048
    %401 = vst.msk [vmem:[#allocation3 + $0x1] sm:$0xff] %vm400, %v396
    %402 = vst.msk [vmem:[#allocation3 + $0x9] sm:$0xff] %vm400, %v397
    %403 = vst.msk [vmem:[#allocation3 + $0x11] sm:$0xff] %vm400, %v398
    %vm404 = vcmask 129024
    %405 = vst.msk [vmem:[#allocation3 + $0x19] sm:$0x7f] %vm404, %v399
    %v406 = vld [vmem:[#allocation3] sm:$0xff]
    %v407 = vld [vmem:[#allocation3 + $0x8] sm:$0xff]
    %v408 = vld [vmem:[#allocation3 + $0x10] sm:$0xff]
    %v409 = vld [vmem:[#allocation3 + $0x18] sm:$0xff]
    %v410 = vsel %vm104, %v406, 0.0
    %v411 = vsel %vm105, %v407, 0.0
    %v412 = vsel %vm106, %v408, 0.0
    %v413 = vsel %vm107, %v409, 0.0
    %v414 = vpack.c.bf16 %v411, %v410
    %v415 = vpack.c.bf16 %v413, %v412
    %v416 = vld [vmem:[%s8] sm:$0xf]
    %v417 = vld [vmem:[%s8 + $0x4] sm:$0xf]
    %v420 = vunpack.c.l.b16 %v416
    %v421 = vunpack.c.l.b16 %v417
    %v422 = vpack.c.b16 %v421, %v420
    %v425 = vsel %vm400, %v414, 0
    %v428 = vsel %vm400, %v415, 0
    %430 = vmatprep.subr.bf16.mxu0 0
    %431 = vmatpush1.bf16.msra.mxu0 %v422
    %432 = vmatprep.subr.bf16.mxu0 0
    %433 = vmatpush1.bf16.msra.mxu0 0
    %434 = vmatprep.subr.bf16.mxu0 0
    %435 = vmatpush1.bf16.msra.mxu0 0
    %436 = vmatprep.subr.bf16.mxu0 0
    %437 = vmatpush1.bf16.msra.mxu0 0
    %438 = vmatprep.subr.bf16.mxu0 0
    %439 = vmatpush1.bf16.msra.mxu0 0
    %440 = vmatprep.subr.bf16.mxu0 0
    %441 = vmatpush1.bf16.msra.mxu0 0
    %442 = vmatprep.subr.bf16.mxu0 0
    %443 = vmatpush1.bf16.msra.mxu0 0
    %444 = vmatprep.subr.bf16.mxu0 0
    %445 = vmatpush1.bf16.msra.mxu0 0
    %446 = vmatprep.subr.bf16.mxu0 0
    %447 = vmatpush1.bf16.msra.mxu0 0
    %448 = vmatprep.subr.bf16.mxu0 0
    %449 = vmatpush1.bf16.msra.mxu0 0
    %450 = vmatprep.subr.bf16.mxu0 0
    %451 = vmatpush1.bf16.msra.mxu0 0
    %452 = vmatprep.subr.bf16.mxu0 0
    %453 = vmatpush1.bf16.msra.mxu0 0
    %454 = vmatprep.subr.bf16.mxu0 0
    %455 = vmatpush1.bf16.msra.mxu0 0
    %456 = vmatprep.subr.bf16.mxu0 0
    %457 = vmatpush1.bf16.msra.mxu0 0
    %458 = vmatprep.subr.bf16.mxu0 0
    %459 = vmatpush1.bf16.msra.mxu0 0
    %460 = vmatprep.subr.bf16.mxu0 0
    %461 = vmatpush1.bf16.msra.mxu0 0
    %462 = vmatprep.mubr.bf16.mxu0 0
    %463 = vmatmul.mubr.bf16.gmra.mrb[0].mxu0 %v425
    %v464 = vpop.f32.mrb[0].mxu0
    %v465 = vadd.f32 0.0, %v464
    %v466 = vpop.f32.mrb[0].mxu0
    %v467 = vpop.f32.mrb[0].mxu0
    %v468 = vadd.f32 0.0, %v467
    %v469 = vpop.f32.mrb[0].mxu0
    %470 = vmatprep.mubr.bf16.mxu0 0
    %471 = vmatmul.mubr.bf16.gmra.mrb[0].mxu0 %v428
    %v472 = vpop.f32.mrb[0].mxu0
    %v473 = vadd.f32 0.0, %v472
    %v474 = vpop.f32.mrb[0].mxu0
    %v475 = vpop.f32.mrb[0].mxu0
    %v476 = vadd.f32 0.0, %v475
    %v477 = vpop.f32.mrb[0].mxu0
    %478 = vdwg.mxu0
    %v481 = vunpack.c.l.b16 %v394
    %v482 = vunpack.c.l.b16 %v395
    %v483 = vpack.c.b16 %v482, %v481
    %v486 = vsel %vm400, %v391, 0
    %v489 = vsel %vm400, %v392, 0
    %491 = vmatprep.subr.bf16.mxu0 0
    %492 = vmatpush1.bf16.msra.mxu0 %v483
    %493 = vmatprep.subr.bf16.mxu0 0
    %494 = vmatpush1.bf16.msra.mxu0 0
    %495 = vmatprep.subr.bf16.mxu0 0
    %496 = vmatpush1.bf16.msra.mxu0 0
    %497 = vmatprep.subr.bf16.mxu0 0
    %498 = vmatpush1.bf16.msra.mxu0 0
    %499 = vmatprep.subr.bf16.mxu0 0
    %500 = vmatpush1.bf16.msra.mxu0 0
    %501 = vmatprep.subr.bf16.mxu0 0
    %502 = vmatpush1.bf16.msra.mxu0 0
    %503 = vmatprep.subr.bf16.mxu0 0
    %504 = vmatpush1.bf16.msra.mxu0 0
    %505 = vmatprep.subr.bf16.mxu0 0
    %506 = vmatpush1.bf16.msra.mxu0 0
    %507 = vmatprep.subr.bf16.mxu0 0
    %508 = vmatpush1.bf16.msra.mxu0 0
    %509 = vmatprep.subr.bf16.mxu0 0
    %510 = vmatpush1.bf16.msra.mxu0 0
    %511 = vmatprep.subr.bf16.mxu0 0
    %512 = vmatpush1.bf16.msra.mxu0 0
    %513 = vmatprep.subr.bf16.mxu0 0
    %514 = vmatpush1.bf16.msra.mxu0 0
    %515 = vmatprep.subr.bf16.mxu0 0
    %516 = vmatpush1.bf16.msra.mxu0 0
    %517 = vmatprep.subr.bf16.mxu0 0
    %518 = vmatpush1.bf16.msra.mxu0 0
    %519 = vmatprep.subr.bf16.mxu0 0
    %520 = vmatpush1.bf16.msra.mxu0 0
    %521 = vmatprep.subr.bf16.mxu0 0
    %522 = vmatpush1.bf16.msra.mxu0 0
    %523 = vmatprep.mubr.bf16.mxu0 0
    %524 = vmatmul.mubr.bf16.gmra.mrb[0].mxu0 %v486
    %v525 = vpop.f32.mrb[0].mxu0
    %v526 = vadd.f32 %v465, %v525
    %v527 = vpop.f32.mrb[0].mxu0
    %v528 = vpop.f32.mrb[0].mxu0
    %v529 = vadd.f32 %v468, %v528
    %v530 = vpop.f32.mrb[0].mxu0
    %531 = vmatprep.mubr.bf16.mxu0 0
    %532 = vmatmul.mubr.bf16.gmra.mrb[0].mxu0 %v489
    %v533 = vpop.f32.mrb[0].mxu0
    %v534 = vadd.f32 %v473, %v533
    %v535 = vpop.f32.mrb[0].mxu0
    %v536 = vpop.f32.mrb[0].mxu0
    %v537 = vadd.f32 %v476, %v536
    %v538 = vpop.f32.mrb[0].mxu0
    %539 = vdwg.mxu0
    %vm540 = vcmask 130049
    %541 = vst.msk [vmem:[#allocation3 - $0x1] sm:$0xfe] %vm540, %v396
    %542 = vst.msk [vmem:[#allocation3 + $0x7] sm:$0xff] %vm400, %v397
    %543 = vst.msk [vmem:[#allocation3 + $0xf] sm:$0xff] %vm400, %v398
    %544 = vst.msk [vmem:[#allocation3 + $0x17] sm:$0xff] %vm400, %v399
    %v545 = vld [vmem:[#allocation3] sm:$0xff]
    %v546 = vld [vmem:[#allocation3 + $0x8] sm:$0xff]
    %v547 = vld [vmem:[#allocation3 + $0x10] sm:$0xff]
    %v548 = vld [vmem:[#allocation3 + $0x18] sm:$0xff]
    %v549 = vsel %vm267, %v545, 0.0
    %v550 = vsel %vm268, %v546, 0.0
    %v551 = vsel %vm269, %v547, 0.0
    %v552 = vsel %vm270, %v548, 0.0
    %v553 = vpack.c.bf16 %v550, %v549
    %v554 = vpack.c.bf16 %v552, %v551
    %s555 = scalar_lea.vmem %s8, 16
    %v556 = vld [vmem:[%s555] sm:$0xf]
    %v557 = vld [vmem:[%s555 + $0x4] sm:$0xf]
    %v560 = vunpack.c.l.b16 %v556
    %v561 = vunpack.c.l.b16 %v557
    %v562 = vpack.c.b16 %v561, %v560
    %v565 = vsel %vm400, %v553, 0
    %v568 = vsel %vm400, %v554, 0
    %570 = vmatprep.subr.bf16.mxu0 0
    %571 = vmatpush1.bf16.msra.mxu0 %v562
    %572 = vmatprep.subr.bf16.mxu0 0
    %573 = vmatpush1.bf16.msra.mxu0 0
    %574 = vmatprep.subr.bf16.mxu0 0
    %575 = vmatpush1.bf16.msra.mxu0 0
    %576 = vmatprep.subr.bf16.mxu0 0
    %577 = vmatpush1.bf16.msra.mxu0 0
    %578 = vmatprep.subr.bf16.mxu0 0
    %579 = vmatpush1.bf16.msra.mxu0 0
    %580 = vmatprep.subr.bf16.mxu0 0
    %581 = vmatpush1.bf16.msra.mxu0 0
    %582 = vmatprep.subr.bf16.mxu0 0
    %583 = vmatpush1.bf16.msra.mxu0 0
    %584 = vmatprep.subr.bf16.mxu0 0
    %585 = vmatpush1.bf16.msra.mxu0 0
    %586 = vmatprep.subr.bf16.mxu0 0
    %587 = vmatpush1.bf16.msra.mxu0 0
    %588 = vmatprep.subr.bf16.mxu0 0
    %589 = vmatpush1.bf16.msra.mxu0 0
    %590 = vmatprep.subr.bf16.mxu0 0
    %591 = vmatpush1.bf16.msra.mxu0 0
    %592 = vmatprep.subr.bf16.mxu0 0
    %593 = vmatpush1.bf16.msra.mxu0 0
    %594 = vmatprep.subr.bf16.mxu0 0
    %595 = vmatpush1.bf16.msra.mxu0 0
    %596 = vmatprep.subr.bf16.mxu0 0
    %597 = vmatpush1.bf16.msra.mxu0 0
    %598 = vmatprep.subr.bf16.mxu0 0
    %599 = vmatpush1.bf16.msra.mxu0 0
    %600 = vmatprep.subr.bf16.mxu0 0
    %601 = vmatpush1.bf16.msra.mxu0 0
    %602 = vmatprep.mubr.bf16.mxu0 0
    %603 = vmatmul.mubr.bf16.gmra.mrb[0].mxu0 %v565
    %v604 = vpop.f32.mrb[0].mxu0
    %v605 = vadd.f32 0.0, %v604
    %v606 = vpop.f32.mrb[0].mxu0
    %v607 = vpop.f32.mrb[0].mxu0
    %v608 = vadd.f32 0.0, %v607
    %v609 = vpop.f32.mrb[0].mxu0
    %610 = vmatprep.mubr.bf16.mxu0 0
    %611 = vmatmul.mubr.bf16.gmra.mrb[0].mxu0 %v568
    %v612 = vpop.f32.mrb[0].mxu0
    %v613 = vadd.f32 0.0, %v612
    %v614 = vpop.f32.mrb[0].mxu0
    %v615 = vpop.f32.mrb[0].mxu0
    %v616 = vadd.f32 0.0, %v615
    %v617 = vpop.f32.mrb[0].mxu0
    %618 = vdwg.mxu0
    %v619 = vadd.f32 %v526, %v605
    %v620 = vadd.f32 %v529, %v608
    %v621 = vadd.f32 %v534, %v613
    %v622 = vadd.f32 %v537, %v616
    %v623 = vld [vmem:[%s9] sm:$0x1]
    %v625 = vlaneseq
    %v626 = vshrl.u32 %v625, 7
    %v627 = vsub.s32 0, %v626
    %v628 = vrot.slane %v623, %v627
    %v630 = vmul.f32 %v619, %v628
    %v631 = vmul.f32 %v620, %v628
    %v632 = vmul.f32 %v621, %v628
    %v633 = vmul.f32 %v622, %v628
    %v634 = vld [vmem:[%s10] sm:$0x1]
    %v636 = vlaneseq
    %v637 = vshrl.u32 %v636, 7
    %v638 = vsub.s32 0, %v637
    %v639 = vrot.slane %v634, %v638
    %v641 = vadd.f32 %v630, %v639
    %v642 = vadd.f32 %v631, %v639
    %v643 = vadd.f32 %v632, %v639
    %v644 = vadd.f32 %v633, %v639
    %v645 = vxor.u32 %v641, 2147483648
    %v646 = vxor.u32 %v642, 2147483648
    %v647 = vxor.u32 %v643, 2147483648
    %v648 = vxor.u32 %v644, 2147483648
    %v649 = vmul.f32 %v645, 1.442695
    %v650 = vpow.pop %v649
    %v651 = vmul.f32 %v646, 1.442695
    %v652 = vpow.pop %v651
    %v653 = vmul.f32 %v647, 1.442695
    %v654 = vpow.pop %v653
    %v655 = vmul.f32 %v648, 1.442695
    %v656 = vpow.pop %v655
    %v657 = vadd.f32 %v650, 1.0
    %v658 = vadd.f32 %v652, 1.0
    %v659 = vadd.f32 %v654, 1.0
    %v660 = vadd.f32 %v656, 1.0
    %v661 = vrcp.pop %v657
    %v662 = vmul.f32 1.0, %v661
    %v663 = vrcp.pop %v658
    %v664 = vmul.f32 1.0, %v663
    %v665 = vrcp.pop %v659
    %v666 = vmul.f32 1.0, %v665
    %v667 = vrcp.pop %v660
    %v668 = vmul.f32 1.0, %v667
    %v669 = vmul.f32 %v641, %v662
    %v670 = vmul.f32 %v642, %v664
    %v671 = vmul.f32 %v643, %v666
    %v672 = vmul.f32 %v644, %v668
    %v673 = vld [vmem:[%s4] sm:$0x3]
    %v674 = vld [vmem:[%s1] sm:$0x3]
    %v675 = vld [vmem:[%s11] sm:$0x1]
    %677 = vset.pattern.permute.xlu0 0
    %678 = vperm.xlu0 %677, %v674
    %v679 = vpop.permute.xlu0 %678
    %v682 = vlaneseq
    %v683 = vshrl.u32 %v682, 7
    %v684 = vsub.s32 0, %v683
    %v685 = vrot.slane %v675, %v684
    %v687 = vmul.f32 %v679, %v685
    %v688 = vld [vmem:[%s12] sm:$0x1]
    %v690 = vlaneseq
    %v691 = vshrl.u32 %v690, 7
    %v692 = vsub.s32 0, %v691
    %v693 = vrot.slane %v688, %v692
    %v695 = vadd.f32 %v687, %v693
    %v696 = vxor.u32 %v695, 2147483648
    %v697 = vmul.f32 %v696, 1.442695
    %v698 = vpow.pop %v697
    %v699 = vadd.f32 %v698, 1.0
    %v700 = vrcp.pop %v699
    %v701 = vmul.f32 1.0, %v700
    %v702 = vmul.f32 %v695, %v701
    %v703 = vld [vmem:[%s13] sm:$0xff]
    %v704 = vld [vmem:[%s13 + $0x8] sm:$0xff]
    %v705 = vld [vmem:[%s13 + $0x10] sm:$0xff]
    %v706 = vld [vmem:[%s13 + $0x18] sm:$0xff]
    %v707 = vld [vmem:[%s14] sm:$0x1]
    %v709 = vlaneseq
    %v710 = vshrl.u32 %v709, 7
    %v711 = vsub.s32 0, %v710
    %v712 = vrot.slane %v707, %v711
    %vm714 = vcmask 261120
    %v716 = vsel %vm714, %v702, 0
    %718 = vmatprep.subr.mxu0 0.0
    %719 = vmatpush1.msra.mxu0 %v703
    %720 = vmatprep.subr.mxu0 0.0
    %721 = vmatpush1.msra.mxu0 %v704
    %722 = vmatprep.subr.mxu0 0.0
    %723 = vmatpush1.msra.mxu0 %v705
    %724 = vmatprep.subr.mxu0 0.0
    %725 = vmatpush1.msra.mxu0 %v706
    %726 = vmatprep.subr.mxu0 0.0
    %727 = vmatpush1.msra.mxu0 0.0
    %728 = vmatprep.subr.mxu0 0.0
    %729 = vmatpush1.msra.mxu0 0.0
    %730 = vmatprep.subr.mxu0 0.0
    %731 = vmatpush1.msra.mxu0 0.0
    %732 = vmatprep.subr.mxu0 0.0
    %733 = vmatpush1.msra.mxu0 0.0
    %734 = vmatprep.subr.mxu0 0.0
    %735 = vmatpush1.msra.mxu0 0.0
    %736 = vmatprep.subr.mxu0 0.0
    %737 = vmatpush1.msra.mxu0 0.0
    %738 = vmatprep.subr.mxu0 0.0
    %739 = vmatpush1.msra.mxu0 0.0
    %740 = vmatprep.subr.mxu0 0.0
    %741 = vmatpush1.msra.mxu0 0.0
    %742 = vmatprep.subr.mxu0 0.0
    %743 = vmatpush1.msra.mxu0 0.0
    %744 = vmatprep.subr.mxu0 0.0
    %745 = vmatpush1.msra.mxu0 0.0
    %746 = vmatprep.subr.mxu0 0.0
    %747 = vmatpush1.msra.mxu0 0.0
    %748 = vmatprep.subr.mxu0 0.0
    %749 = vmatpush1.msra.mxu0 0.0
    %750 = vmatprep.subr.mxu0 0.0
    %751 = vmatpush1.msra.mxu0 0.0
    %752 = vmatprep.subr.mxu0 0.0
    %753 = vmatpush1.msra.mxu0 0.0
    %754 = vmatprep.subr.mxu0 0.0
    %755 = vmatpush1.msra.mxu0 0.0
    %756 = vmatprep.subr.mxu0 0.0
    %757 = vmatpush1.msra.mxu0 0.0
    %758 = vmatprep.subr.mxu0 0.0
    %759 = vmatpush1.msra.mxu0 0.0
    %760 = vmatprep.subr.mxu0 0.0
    %761 = vmatpush1.msra.mxu0 0.0
    %762 = vmatprep.subr.mxu0 0.0
    %763 = vmatpush1.msra.mxu0 0.0
    %764 = vmatprep.subr.mxu0 0.0
    %765 = vmatpush1.msra.mxu0 0.0
    %766 = vmatprep.subr.mxu0 0.0
    %767 = vmatpush1.msra.mxu0 0.0
    %768 = vmatprep.subr.mxu0 0.0
    %769 = vmatpush1.msra.mxu0 0.0
    %770 = vmatprep.subr.mxu0 0.0
    %771 = vmatpush1.msra.mxu0 0.0
    %772 = vmatprep.subr.mxu0 0.0
    %773 = vmatpush1.msra.mxu0 0.0
    %774 = vmatprep.subr.mxu0 0.0
    %775 = vmatpush1.msra.mxu0 0.0
    %776 = vmatprep.subr.mxu0 0.0
    %777 = vmatpush1.msra.mxu0 0.0
    %778 = vmatprep.subr.mxu0 0.0
    %779 = vmatpush1.msra.mxu0 0.0
    %780 = vmatprep.subr.mxu0 0.0
    %781 = vmatpush1.msra.mxu0 0.0
    %782 = vmatprep.mubr.f32.mxu0 0.0
    %783 = vmatmul.mubr.f32.gmra.mrb[0].mxu0 %v716
    %v784 = vpop.f32.mrb[0].mxu0
    %v785 = vadd.f32 %v712, %v784
    %v786 = vpop.f32.mrb[0].mxu0
    %787 = vdwg.mxu0
    %v789 = vsel %vm714, %v673, 0
    %791 = vmatprep.subr.mxu0 0.0
    %792 = vmatpush1.msra.mxu0 %v669
    %793 = vmatprep.subr.mxu0 0.0
    %794 = vmatpush1.msra.mxu0 %v670
    %795 = vmatprep.subr.mxu0 0.0
    %796 = vmatpush1.msra.mxu0 %v671
    %797 = vmatprep.subr.mxu0 0.0
    %798 = vmatpush1.msra.mxu0 %v672
    %799 = vmatprep.subr.mxu0 0.0
    %800 = vmatpush1.msra.mxu0 0.0
    %801 = vmatprep.subr.mxu0 0.0
    %802 = vmatpush1.msra.mxu0 0.0
    %803 = vmatprep.subr.mxu0 0.0
    %804 = vmatpush1.msra.mxu0 0.0
    %805 = vmatprep.subr.mxu0 0.0
    %806 = vmatpush1.msra.mxu0 0.0
    %807 = vmatprep.subr.mxu0 0.0
    %808 = vmatpush1.msra.mxu0 0.0
    %809 = vmatprep.subr.mxu0 0.0
    %810 = vmatpush1.msra.mxu0 0.0
    %811 = vmatprep.subr.mxu0 0.0
    %812 = vmatpush1.msra.mxu0 0.0
    %813 = vmatprep.subr.mxu0 0.0
    %814 = vmatpush1.msra.mxu0 0.0
    %815 = vmatprep.subr.mxu0 0.0
    %816 = vmatpush1.msra.mxu0 0.0
    %817 = vmatprep.subr.mxu0 0.0
    %818 = vmatpush1.msra.mxu0 0.0
    %819 = vmatprep.subr.mxu0 0.0
    %820 = vmatpush1.msra.mxu0 0.0
    %821 = vmatprep.subr.mxu0 0.0
    %822 = vmatpush1.msra.mxu0 0.0
    %823 = vmatprep.subr.mxu0 0.0
    %824 = vmatpush1.msra.mxu0 0.0
    %825 = vmatprep.subr.mxu0 0.0
    %826 = vmatpush1.msra.mxu0 0.0
    %827 = vmatprep.subr.mxu0 0.0
    %828 = vmatpush1.msra.mxu0 0.0
    %829 = vmatprep.subr.mxu0 0.0
    %830 = vmatpush1.msra.mxu0 0.0
    %831 = vmatprep.subr.mxu0 0.0
    %832 = vmatpush1.msra.mxu0 0.0
    %833 = vmatprep.subr.mxu0 0.0
    %834 = vmatpush1.msra.mxu0 0.0
    %835 = vmatprep.subr.mxu0 0.0
    %836 = vmatpush1.msra.mxu0 0.0
    %837 = vmatprep.subr.mxu0 0.0
    %838 = vmatpush1.msra.mxu0 0.0
    %839 = vmatprep.subr.mxu0 0.0
    %840 = vmatpush1.msra.mxu0 0.0
    %841 = vmatprep.subr.mxu0 0.0
    %842 = vmatpush1.msra.mxu0 0.0
    %843 = vmatprep.subr.mxu0 0.0
    %844 = vmatpush1.msra.mxu0 0.0
    %845 = vmatprep.subr.mxu0 0.0
    %846 = vmatpush1.msra.mxu0 0.0
    %847 = vmatprep.subr.mxu0 0.0
    %848 = vmatpush1.msra.mxu0 0.0
    %849 = vmatprep.subr.mxu0 0.0
    %850 = vmatpush1.msra.mxu0 0.0
    %851 = vmatprep.subr.mxu0 0.0
    %852 = vmatpush1.msra.mxu0 0.0
    %853 = vmatprep.subr.mxu0 0.0
    %854 = vmatpush1.msra.mxu0 0.0
    %855 = vmatprep.mubr.f32.mxu0 0.0
    %856 = vmatmul.mubr.f32.gmra.mrb[0].mxu0 %v789
    %v857 = vpop.f32.mrb[0].mxu0
    %v858 = vadd.f32 %v785, %v857
    %v859 = vpop.f32.mrb[0].mxu0
    %860 = vdwg.mxu0
    %vm861 = vcmask 254976
    %862 = vst.msk [vmem:[#allocation4] sm:$0x3] %vm861, %v858
    // Predicated region
    $region62: #{tpu_custom_call.1} parent=1 // pred_check
      _
    $region63: #{tpu_custom_call.1} parent=1 // pred_check_branch
      %864 = sbr.rel (0) target = $region65
    $region64: #{tpu_custom_call.1} parent=1 // pred_region
      %s866 = ssub.s32 32, 32
      %867 = vsyncadd [#allocation5], %s866
      %s869 = sshll.u32 [#allocation4], 4
      %s870 = int_to_ptr.vmem [resolvable:$true] %s869
      %872 = dma.vmem_to_hbm [thread:$0]  %s870, 32, %s15, [#allocation5]
    $region65: #{tpu_custom_call.1} parent=1 // pred_fallthru
      _
    // Predicated region
    $region66: #{tpu_custom_call.1} parent=1 // pred_check
      _
    $region67: #{tpu_custom_call.1} parent=1 // pred_check_branch
      %874 = sbr.rel (0) target = $region69
    $region68: #{tpu_custom_call.1} parent=1 // pred_region
      %875 = dma.done [#allocation5], 32
    $region69: #{tpu_custom_call.1} parent=1 // pred_fallthru
      _
    %876 = vsyncpa [#allocation5], 1

</llo_original>
